<compile_context>
chip_gen: v5e
topology: v5e:2x2
jax: 0.10.0
libtpu: 0.0.40
codegen_flags: <defaults>
</compile_context>

<pallas_src>
import jax
import jax.numpy as jnp
from jax.experimental import pallas as pl
from jax.experimental.pallas import tpu as pltpu


# --------------------------------------------------------------------------
# helpers
# --------------------------------------------------------------------------
def _lane_tile(m, cap=512):
    """Largest multiple of 128 that divides m and is <= cap, else m (full block)."""
    t = cap
    while t >= 128:
        if m % t == 0:
            return t
        t -= 128
    return m


def pooled_patches(x_cm, k):
    """x_cm: (Cin, N, H, W). Valid conv (kernel k) followed by 2x2 max-pool.

    Returns (P, (n, hp, wp)) with P: (4, Cin*k*k, N*Hp*Wp).
    Quadrant q = dr*2+dc holds the im2col columns for conv-output positions
    (2*rp+dr, 2*cp+dc); row order (cin, kh, kw) matches the PyTorch weight flatten;
    column order is (n, rp, cp) row-major.
    """
    cin, n, h, w = x_cm.shape
    hp, wp = (h - k + 1) // 2, (w - k + 1) // 2
    taps = jnp.stack(
        [x_cm[:, :, i:i + 2 * hp, j:j + 2 * wp] for i in range(k) for j in range(k)],
        axis=0)                                           # (kk, cin, n, 2hp, 2wp)
    taps = taps.transpose(1, 0, 2, 3, 4)                  # (cin, kk, n, 2hp, 2wp)
    taps = taps.reshape(cin, k * k, n, hp, 2, wp, 2)      # split (rp,dr),(cp,dc)
    taps = taps.transpose(4, 6, 0, 1, 2, 3, 5)            # (dr, dc, cin, kk, n, hp, wp)
    return taps.reshape(4, cin * k * k, n * hp * wp), (n, hp, wp)


# --------------------------------------------------------------------------
# Pallas kernels
# --------------------------------------------------------------------------
def _conv_pool_relu_kernel(p_ref, w_ref, b_ref, o_ref):
    # p: (4, K, TM) pool-quadrant im2col blocks; w: (Cout, K); b: (Cout, 1)
    # out = relu(max_q(w @ p[q]) + b)   (bias per-channel -> add after max is exact)
    w = w_ref[...]
    acc = jnp.dot(w, p_ref[0], preferred_element_type=jnp.float32)
    for q in range(1, 4):
        acc = jnp.maximum(acc, jnp.dot(w, p_ref[q], preferred_element_type=jnp.float32))
    acc = acc + b_ref[...]
    o_ref[...] = jnp.maximum(acc, 0.0).astype(o_ref.dtype)


def _mlp_kernel(x_ref, w1_ref, b1_ref, w2_ref, b2_ref, o_ref):
    # x: (F, TN) feature-major; w1: (H, F); w2: (O, H). Hidden stays on-chip.
    h = jnp.dot(w1_ref[...], x_ref[...], preferred_element_type=jnp.float32) + b1_ref[...]
    h = jnp.maximum(h, 0.0)
    o = jnp.dot(w2_ref[...], h, preferred_element_type=jnp.float32) + b2_ref[...]
    o_ref[...] = o.astype(o_ref.dtype)


# --------------------------------------------------------------------------
# Pallas wrappers
# --------------------------------------------------------------------------
def conv_pool_relu(x_cm, weight, bias):
    """Fused valid conv (stride 1) + bias + 2x2 maxpool + relu.

    x_cm: (Cin, N, H, W) channel-major; weight: (Cout, Cin, k, k); bias: (Cout,)
    Returns (Cout, N, Hp, Wp) channel-major.
    """
    cout, cin, k, _ = weight.shape
    patches, (n, hp, wp) = pooled_patches(x_cm, k)        # (4, K, M)
    kk = cin * k * k
    m = n * hp * wp
    w_mat = weight.reshape(cout, kk)
    b_mat = bias.reshape(cout, 1)
    tm = _lane_tile(m)
    out = pl.pallas_call(
        _conv_pool_relu_kernel,
        out_shape=jax.ShapeDtypeStruct((cout, m), jnp.float32),
        grid=(m // tm,),
        in_specs=[
            pl.BlockSpec((4, kk, tm), lambda i: (0, 0, i)),
            pl.BlockSpec((cout, kk), lambda i: (0, 0)),
            pl.BlockSpec((cout, 1), lambda i: (0, 0)),
        ],
        out_specs=pl.BlockSpec((cout, tm), lambda i: (0, i)),
        compiler_params=pltpu.CompilerParams(dimension_semantics=("parallel",)),
    )(patches, w_mat, b_mat)
    return out.reshape(cout, n, hp, wp)


def mlp_pallas(x, w1, b1, w2, b2):
    """Fused fc1 + relu + fc2. x: (F, N) feature-major -> (O, N)."""
    f, n = x.shape
    hdim = w1.shape[0]
    odim = w2.shape[0]
    tn = _lane_tile(n)
    return pl.pallas_call(
        _mlp_kernel,
        out_shape=jax.ShapeDtypeStruct((odim, n), jnp.float32),
        grid=(n // tn,),
        in_specs=[
            pl.BlockSpec((f, tn), lambda i: (0, i)),
            pl.BlockSpec((hdim, f), lambda i: (0, 0)),
            pl.BlockSpec((hdim, 1), lambda i: (0, 0)),
            pl.BlockSpec((odim, hdim), lambda i: (0, 0)),
            pl.BlockSpec((odim, 1), lambda i: (0, 0)),
        ],
        out_specs=pl.BlockSpec((odim, tn), lambda i: (0, i)),
        compiler_params=pltpu.CompilerParams(dimension_semantics=("parallel",)),
    )(x, w1, b1.reshape(hdim, 1), w2, b2.reshape(odim, 1))


# --------------------------------------------------------------------------
# Model
# --------------------------------------------------------------------------
def init_params(key):
    ks = jax.random.split(key, 8)
    scale = 0.1
    return {
        "conv1_w": jax.random.normal(ks[0], (10, 1, 5, 5), jnp.float32) * scale,
        "conv1_b": jax.random.normal(ks[1], (10,), jnp.float32) * scale,
        "conv2_w": jax.random.normal(ks[2], (20, 10, 5, 5), jnp.float32) * scale,
        "conv2_b": jax.random.normal(ks[3], (20,), jnp.float32) * scale,
        "fc1_w": jax.random.normal(ks[4], (50, 320), jnp.float32) * scale,   # (out, in)
        "fc1_b": jax.random.normal(ks[5], (50,), jnp.float32) * scale,
        "fc2_w": jax.random.normal(ks[6], (10, 50), jnp.float32) * scale,    # (out, in)
        "fc2_b": jax.random.normal(ks[7], (10,), jnp.float32) * scale,
    }


def net_forward(params, x):
    # x: (N, 1, 28, 28) NCHW float32
    n = x.shape[0]
    x_cm = jnp.transpose(x, (1, 0, 2, 3))                              # (1, N, 28, 28)
    # conv1 -> maxpool2 -> relu  (fused)
    h1 = conv_pool_relu(x_cm, params["conv1_w"], params["conv1_b"])    # (10, N, 12, 12)
    # conv2 -> dropout2d(eval: identity) -> maxpool2 -> relu  (fused)
    h2 = conv_pool_relu(h1, params["conv2_w"], params["conv2_b"])      # (20, N, 4, 4)
    # flatten to match torch .view(-1, 320) on NCHW: feature = c*16 + r*4 + col
    x_fc = jnp.transpose(h2, (0, 2, 3, 1)).reshape(20 * 4 * 4, n)      # (320, N)
    # fc1 + relu -> dropout(eval: identity) -> fc2  (fused)
    out = mlp_pallas(x_fc, params["fc1_w"], params["fc1_b"],
                     params["fc2_w"], params["fc2_b"])                 # (10, N)
    return out.T                                                       # (N, 10)


if __name__ == "__main__":
    key = jax.random.PRNGKey(0)
    k_in, k_par = jax.random.split(key)
    # Flatten to 320 requires 28x28 single-channel input.
    x = jax.random.normal(k_in, (2, 1, 28, 28), jnp.float32)
    params = init_params(k_par)

    fwd = jax.jit(net_forward)
    out = fwd(params, x)
    out = jax.block_until_ready(out)
    assert out.shape == (2, 10) and out.dtype == jnp.float32
    assert bool(jnp.all(jnp.isfinite(out)))
    print("KERNEL_OK")
</pallas_src>

<mosaic_0001>
module attributes {stable_mosaic.version = 11 : i64} {
  func.func @_conv_pool_relu_kernel(%arg0: i32, %arg1: memref<4x25x288xf32, #tpu.memory_space<vmem>>, %arg2: memref<10x25xf32, #tpu.memory_space<vmem>>, %arg3: memref<10x1xf32, #tpu.memory_space<vmem>>, %arg4: memref<10x288xf32, #tpu.memory_space<vmem>>) attributes {dimension_semantics = [#tpu.dimension_semantics<parallel>], iteration_bounds = array<i64: 1>, scalar_prefetch = 0 : i64, scratch_operands = 0 : i64, tpu.core_type = #tpu.core_type<tc>, window_params = [{transform_indices = @transform_0, window_bounds = array<i64: 4, 25, 288>}, {pipeline_mode = #tpu.pipeline_mode<synchronous>, transform_indices = @transform_1, window_bounds = array<i64: 10, 25>}, {pipeline_mode = #tpu.pipeline_mode<synchronous>, transform_indices = @transform_2, window_bounds = array<i64: 10, 1>}, {transform_indices = @transform_3, window_bounds = array<i64: 10, 288>}]} {
    %c0 = arith.constant 0 : index
    %c0_0 = arith.constant 0 : index
    %0 = vector.load %arg2[%c0, %c0_0] : memref<10x25xf32, #tpu.memory_space<vmem>>, vector<10x25xf32>
    %c0_1 = arith.constant 0 : index
    %c0_2 = arith.constant 0 : index
    %c0_3 = arith.constant 0 : index
    %1 = vector.load %arg1[%c0_1, %c0_2, %c0_3] : memref<4x25x288xf32, #tpu.memory_space<vmem>>, vector<1x25x288xf32>
    %2 = vector.shape_cast %1 : vector<1x25x288xf32> to vector<25x288xf32>
    %cst = arith.constant dense<0.000000e+00> : vector<10x288xf32>
    %3 = tpu.matmul %0, %2, %cst {dimension_numbers = #tpu.dot_dimension_numbers<[1], [0], [0], [1], [0, 0, 1, 1], [], []>} : vector<10x25xf32>, vector<25x288xf32>, vector<10x288xf32> -> vector<10x288xf32>
    %c1 = arith.constant 1 : index
    %c0_4 = arith.constant 0 : index
    %c0_5 = arith.constant 0 : index
    %4 = vector.load %arg1[%c1, %c0_4, %c0_5] : memref<4x25x288xf32, #tpu.memory_space<vmem>>, vector<1x25x288xf32>
    %5 = vector.shape_cast %4 : vector<1x25x288xf32> to vector<25x288xf32>
    %cst_6 = arith.constant dense<0.000000e+00> : vector<10x288xf32>
    %6 = tpu.matmul %0, %5, %cst_6 {dimension_numbers = #tpu.dot_dimension_numbers<[1], [0], [0], [1], [0, 0, 1, 1], [], []>} : vector<10x25xf32>, vector<25x288xf32>, vector<10x288xf32> -> vector<10x288xf32>
    %7 = arith.maximumf %3, %6 : vector<10x288xf32>
    %c2 = arith.constant 2 : index
    %c0_7 = arith.constant 0 : index
    %c0_8 = arith.constant 0 : index
    %8 = vector.load %arg1[%c2, %c0_7, %c0_8] : memref<4x25x288xf32, #tpu.memory_space<vmem>>, vector<1x25x288xf32>
    %9 = vector.shape_cast %8 : vector<1x25x288xf32> to vector<25x288xf32>
    %cst_9 = arith.constant dense<0.000000e+00> : vector<10x288xf32>
    %10 = tpu.matmul %0, %9, %cst_9 {dimension_numbers = #tpu.dot_dimension_numbers<[1], [0], [0], [1], [0, 0, 1, 1], [], []>} : vector<10x25xf32>, vector<25x288xf32>, vector<10x288xf32> -> vector<10x288xf32>
    %11 = arith.maximumf %7, %10 : vector<10x288xf32>
    %c3 = arith.constant 3 : index
    %c0_10 = arith.constant 0 : index
    %c0_11 = arith.constant 0 : index
    %12 = vector.load %arg1[%c3, %c0_10, %c0_11] : memref<4x25x288xf32, #tpu.memory_space<vmem>>, vector<1x25x288xf32>
    %13 = vector.shape_cast %12 : vector<1x25x288xf32> to vector<25x288xf32>
    %cst_12 = arith.constant dense<0.000000e+00> : vector<10x288xf32>
    %14 = tpu.matmul %0, %13, %cst_12 {dimension_numbers = #tpu.dot_dimension_numbers<[1], [0], [0], [1], [0, 0, 1, 1], [], []>} : vector<10x25xf32>, vector<25x288xf32>, vector<10x288xf32> -> vector<10x288xf32>
    %15 = arith.maximumf %11, %14 : vector<10x288xf32>
    %c0_13 = arith.constant 0 : index
    %c0_14 = arith.constant 0 : index
    %16 = vector.load %arg3[%c0_13, %c0_14] : memref<10x1xf32, #tpu.memory_space<vmem>>, vector<10x1xf32>
    %17 = vector.broadcast %16 : vector<10x1xf32> to vector<10x288xf32>
    %18 = arith.addf %15, %17 : vector<10x288xf32>
    %cst_15 = arith.constant 0.000000e+00 : f32
    %19 = vector.broadcast %cst_15 : f32 to vector<10x288xf32>
    %20 = arith.maximumf %18, %19 : vector<10x288xf32>
    %c0_16 = arith.constant 0 : index
    %c0_17 = arith.constant 0 : index
    %21 = vector.load %arg4[%c0_16, %c0_17] : memref<10x288xf32, #tpu.memory_space<vmem>>, vector<10x288xf32>
    tpu.vector_store %arg4[%c0_16, %c0_17], %20 {strides = array<i32>} : memref<10x288xf32, #tpu.memory_space<vmem>>, vector<10x288xf32>,
    return
  }
  func.func @transform_0(%arg0: i32) -> (i32, i32, i32) {
    %c0_i32 = arith.constant 0 : i32
    %c0_i32_0 = arith.constant 0 : i32
    %c0_i32_1 = arith.constant 0 : i32
    return %c0_i32, %c0_i32_0, %arg0 : i32, i32, i32
  }
  func.func @transform_1(%arg0: i32) -> (i32, i32) {
    %c0_i32 = arith.constant 0 : i32
    %c0_i32_0 = arith.constant 0 : i32
    %c0_i32_1 = arith.constant 0 : i32
    return %c0_i32, %c0_i32_0 : i32, i32
  }
  func.func @transform_2(%arg0: i32) -> (i32, i32) {
    %c0_i32 = arith.constant 0 : i32
    %c0_i32_0 = arith.constant 0 : i32
    %c0_i32_1 = arith.constant 0 : i32
    return %c0_i32, %c0_i32_0 : i32, i32
  }
  func.func @transform_3(%arg0: i32) -> (i32, i32) {
    %c0_i32 = arith.constant 0 : i32
    %c0_i32_0 = arith.constant 0 : i32
    return %c0_i32, %arg0 : i32, i32
  }
}

module attributes {stable_mosaic.version = 11 : i64} {
  func.func @_conv_pool_relu_kernel(%arg0: i32, %arg1: memref<4x250x32xf32, #tpu.memory_space<vmem>>, %arg2: memref<20x250xf32, #tpu.memory_space<vmem>>, %arg3: memref<20x1xf32, #tpu.memory_space<vmem>>, %arg4: memref<20x32xf32, #tpu.memory_space<vmem>>) attributes {dimension_semantics = [#tpu.dimension_semantics<parallel>], iteration_bounds = array<i64: 1>, scalar_prefetch = 0 : i64, scratch_operands = 0 : i64, tpu.core_type = #tpu.core_type<tc>, window_params = [{transform_indices = @transform_0, window_bounds = array<i64: 4, 250, 32>}, {pipeline_mode = #tpu.pipeline_mode<synchronous>, transform_indices = @transform_1, window_bounds = array<i64: 20, 250>}, {pipeline_mode = #tpu.pipeline_mode<synchronous>, transform_indices = @transform_2, window_bounds = array<i64: 20, 1>}, {transform_indices = @transform_3, window_bounds = array<i64: 20, 32>}]} {
    %c0 = arith.constant 0 : index
    %c0_0 = arith.constant 0 : index
    %0 = vector.load %arg2[%c0, %c0_0] : memref<20x250xf32, #tpu.memory_space<vmem>>, vector<20x250xf32>
    %c0_1 = arith.constant 0 : index
    %c0_2 = arith.constant 0 : index
    %c0_3 = arith.constant 0 : index
    %1 = vector.load %arg1[%c0_1, %c0_2, %c0_3] : memref<4x250x32xf32, #tpu.memory_space<vmem>>, vector<1x250x32xf32>
    %2 = vector.shape_cast %1 : vector<1x250x32xf32> to vector<250x32xf32>
    %cst = arith.constant dense<0.000000e+00> : vector<20x32xf32>
    %3 = tpu.matmul %0, %2, %cst {dimension_numbers = #tpu.dot_dimension_numbers<[1], [0], [0], [1], [0, 0, 1, 1], [], []>} : vector<20x250xf32>, vector<250x32xf32>, vector<20x32xf32> -> vector<20x32xf32>
    %c1 = arith.constant 1 : index
    %c0_4 = arith.constant 0 : index
    %c0_5 = arith.constant 0 : index
    %4 = vector.load %arg1[%c1, %c0_4, %c0_5] : memref<4x250x32xf32, #tpu.memory_space<vmem>>, vector<1x250x32xf32>
    %5 = vector.shape_cast %4 : vector<1x250x32xf32> to vector<250x32xf32>
    %cst_6 = arith.constant dense<0.000000e+00> : vector<20x32xf32>
    %6 = tpu.matmul %0, %5, %cst_6 {dimension_numbers = #tpu.dot_dimension_numbers<[1], [0], [0], [1], [0, 0, 1, 1], [], []>} : vector<20x250xf32>, vector<250x32xf32>, vector<20x32xf32> -> vector<20x32xf32>
    %7 = arith.maximumf %3, %6 : vector<20x32xf32>
    %c2 = arith.constant 2 : index
    %c0_7 = arith.constant 0 : index
    %c0_8 = arith.constant 0 : index
    %8 = vector.load %arg1[%c2, %c0_7, %c0_8] : memref<4x250x32xf32, #tpu.memory_space<vmem>>, vector<1x250x32xf32>
    %9 = vector.shape_cast %8 : vector<1x250x32xf32> to vector<250x32xf32>
    %cst_9 = arith.constant dense<0.000000e+00> : vector<20x32xf32>
    %10 = tpu.matmul %0, %9, %cst_9 {dimension_numbers = #tpu.dot_dimension_numbers<[1], [0], [0], [1], [0, 0, 1, 1], [], []>} : vector<20x250xf32>, vector<250x32xf32>, vector<20x32xf32> -> vector<20x32xf32>
    %11 = arith.maximumf %7, %10 : vector<20x32xf32>
    %c3 = arith.constant 3 : index
    %c0_10 = arith.constant 0 : index
    %c0_11 = arith.constant 0 : index
    %12 = vector.load %arg1[%c3, %c0_10, %c0_11] : memref<4x250x32xf32, #tpu.memory_space<vmem>>, vector<1x250x32xf32>
    %13 = vector.shape_cast %12 : vector<1x250x32xf32> to vector<250x32xf32>
    %cst_12 = arith.constant dense<0.000000e+00> : vector<20x32xf32>
    %14 = tpu.matmul %0, %13, %cst_12 {dimension_numbers = #tpu.dot_dimension_numbers<[1], [0], [0], [1], [0, 0, 1, 1], [], []>} : vector<20x250xf32>, vector<250x32xf32>, vector<20x32xf32> -> vector<20x32xf32>
    %15 = arith.maximumf %11, %14 : vector<20x32xf32>
    %c0_13 = arith.constant 0 : index
    %c0_14 = arith.constant 0 : index
    %16 = vector.load %arg3[%c0_13, %c0_14] : memref<20x1xf32, #tpu.memory_space<vmem>>, vector<20x1xf32>
    %17 = vector.broadcast %16 : vector<20x1xf32> to vector<20x32xf32>
    %18 = arith.addf %15, %17 : vector<20x32xf32>
    %cst_15 = arith.constant 0.000000e+00 : f32
    %19 = vector.broadcast %cst_15 : f32 to vector<20x32xf32>
    %20 = arith.maximumf %18, %19 : vector<20x32xf32>
    %c0_16 = arith.constant 0 : index
    %c0_17 = arith.constant 0 : index
    %21 = vector.load %arg4[%c0_16, %c0_17] : memref<20x32xf32, #tpu.memory_space<vmem>>, vector<20x32xf32>
    tpu.vector_store %arg4[%c0_16, %c0_17], %20 {strides = array<i32>} : memref<20x32xf32, #tpu.memory_space<vmem>>, vector<20x32xf32>,
    return
  }
  func.func @transform_0(%arg0: i32) -> (i32, i32, i32) {
    %c0_i32 = arith.constant 0 : i32
    %c0_i32_0 = arith.constant 0 : i32
    %c0_i32_1 = arith.constant 0 : i32
    return %c0_i32, %c0_i32_0, %arg0 : i32, i32, i32
  }
  func.func @transform_1(%arg0: i32) -> (i32, i32) {
    %c0_i32 = arith.constant 0 : i32
    %c0_i32_0 = arith.constant 0 : i32
    %c0_i32_1 = arith.constant 0 : i32
    return %c0_i32, %c0_i32_0 : i32, i32
  }
  func.func @transform_2(%arg0: i32) -> (i32, i32) {
    %c0_i32 = arith.constant 0 : i32
    %c0_i32_0 = arith.constant 0 : i32
    %c0_i32_1 = arith.constant 0 : i32
    return %c0_i32, %c0_i32_0 : i32, i32
  }
  func.func @transform_3(%arg0: i32) -> (i32, i32) {
    %c0_i32 = arith.constant 0 : i32
    %c0_i32_0 = arith.constant 0 : i32
    return %c0_i32, %arg0 : i32, i32
  }
}

module attributes {stable_mosaic.version = 11 : i64} {
  func.func @_mlp_kernel(%arg0: i32, %arg1: memref<320x2xf32, #tpu.memory_space<vmem>>, %arg2: memref<50x320xf32, #tpu.memory_space<vmem>>, %arg3: memref<50x1xf32, #tpu.memory_space<vmem>>, %arg4: memref<10x50xf32, #tpu.memory_space<vmem>>, %arg5: memref<10x1xf32, #tpu.memory_space<vmem>>, %arg6: memref<10x2xf32, #tpu.memory_space<vmem>>) attributes {dimension_semantics = [#tpu.dimension_semantics<parallel>], iteration_bounds = array<i64: 1>, scalar_prefetch = 0 : i64, scratch_operands = 0 : i64, tpu.core_type = #tpu.core_type<tc>, window_params = [{transform_indices = @transform_0, window_bounds = array<i64: 320, 2>}, {pipeline_mode = #tpu.pipeline_mode<synchronous>, transform_indices = @transform_1, window_bounds = array<i64: 50, 320>}, {pipeline_mode = #tpu.pipeline_mode<synchronous>, transform_indices = @transform_2, window_bounds = array<i64: 50, 1>}, {pipeline_mode = #tpu.pipeline_mode<synchronous>, transform_indices = @transform_3, window_bounds = array<i64: 10, 50>}, {pipeline_mode = #tpu.pipeline_mode<synchronous>, transform_indices = @transform_4, window_bounds = array<i64: 10, 1>}, {transform_indices = @transform_5, window_bounds = array<i64: 10, 2>}]} {
    %c0 = arith.constant 0 : index
    %c0_0 = arith.constant 0 : index
    %0 = vector.load %arg2[%c0, %c0_0] : memref<50x320xf32, #tpu.memory_space<vmem>>, vector<50x320xf32>
    %c0_1 = arith.constant 0 : index
    %c0_2 = arith.constant 0 : index
    %1 = vector.load %arg1[%c0_1, %c0_2] : memref<320x2xf32, #tpu.memory_space<vmem>>, vector<320x2xf32>
    %cst = arith.constant dense<0.000000e+00> : vector<50x2xf32>
    %2 = tpu.matmul %0, %1, %cst {dimension_numbers = #tpu.dot_dimension_numbers<[1], [0], [0], [1], [0, 0, 1, 1], [], []>} : vector<50x320xf32>, vector<320x2xf32>, vector<50x2xf32> -> vector<50x2xf32>
    %c0_3 = arith.constant 0 : index
    %c0_4 = arith.constant 0 : index
    %3 = vector.load %arg3[%c0_3, %c0_4] : memref<50x1xf32, #tpu.memory_space<vmem>>, vector<50x1xf32>
    %4 = vector.broadcast %3 : vector<50x1xf32> to vector<50x2xf32>
    %5 = arith.addf %2, %4 : vector<50x2xf32>
    %cst_5 = arith.constant 0.000000e+00 : f32
    %6 = vector.broadcast %cst_5 : f32 to vector<50x2xf32>
    %7 = arith.maximumf %5, %6 : vector<50x2xf32>
    %c0_6 = arith.constant 0 : index
    %c0_7 = arith.constant 0 : index
    %8 = vector.load %arg4[%c0_6, %c0_7] : memref<10x50xf32, #tpu.memory_space<vmem>>, vector<10x50xf32>
    %cst_8 = arith.constant dense<0.000000e+00> : vector<10x2xf32>
    %9 = tpu.matmul %8, %7, %cst_8 {dimension_numbers = #tpu.dot_dimension_numbers<[1], [0], [0], [1], [0, 0, 1, 1], [], []>} : vector<10x50xf32>, vector<50x2xf32>, vector<10x2xf32> -> vector<10x2xf32>
    %c0_9 = arith.constant 0 : index
    %c0_10 = arith.constant 0 : index
    %10 = vector.load %arg5[%c0_9, %c0_10] : memref<10x1xf32, #tpu.memory_space<vmem>>, vector<10x1xf32>
    %11 = vector.broadcast %10 : vector<10x1xf32> to vector<10x2xf32>
    %12 = arith.addf %9, %11 : vector<10x2xf32>
    %c0_11 = arith.constant 0 : index
    %c0_12 = arith.constant 0 : index
    %13 = vector.load %arg6[%c0_11, %c0_12] : memref<10x2xf32, #tpu.memory_space<vmem>>, vector<10x2xf32>
    tpu.vector_store %arg6[%c0_11, %c0_12], %12 {strides = array<i32>} : memref<10x2xf32, #tpu.memory_space<vmem>>, vector<10x2xf32>,
    return
  }
  func.func @transform_0(%arg0: i32) -> (i32, i32) {
    %c0_i32 = arith.constant 0 : i32
    %c0_i32_0 = arith.constant 0 : i32
    return %c0_i32, %arg0 : i32, i32
  }
  func.func @transform_1(%arg0: i32) -> (i32, i32) {
    %c0_i32 = arith.constant 0 : i32
    %c0_i32_0 = arith.constant 0 : i32
    %c0_i32_1 = arith.constant 0 : i32
    return %c0_i32, %c0_i32_0 : i32, i32
  }
  func.func @transform_2(%arg0: i32) -> (i32, i32) {
    %c0_i32 = arith.constant 0 : i32
    %c0_i32_0 = arith.constant 0 : i32
    %c0_i32_1 = arith.constant 0 : i32
    return %c0_i32, %c0_i32_0 : i32, i32
  }
  func.func @transform_3(%arg0: i32) -> (i32, i32) {
    %c0_i32 = arith.constant 0 : i32
    %c0_i32_0 = arith.constant 0 : i32
    %c0_i32_1 = arith.constant 0 : i32
    return %c0_i32, %c0_i32_0 : i32, i32
  }
  func.func @transform_4(%arg0: i32) -> (i32, i32) {
    %c0_i32 = arith.constant 0 : i32
    %c0_i32_0 = arith.constant 0 : i32
    %c0_i32_1 = arith.constant 0 : i32
    return %c0_i32, %c0_i32_0 : i32, i32
  }
  func.func @transform_5(%arg0: i32) -> (i32, i32) {
    %c0_i32 = arith.constant 0 : i32
    %c0_i32_0 = arith.constant 0 : i32
    return %c0_i32, %arg0 : i32, i32
  }
}

</mosaic_0001>

<llo_original>
// kernel: net_forward.3
$region0: #{net_forward.3}
  #allocation0 [shape = 'u32[]', space=smem, size = 0x4, offset = 0x4, fixed_abs, tag = 'smem constant byte address 0x4 - core index']
  #allocation1 [shape = 'u32[72,128]{1,0:T(1,128)}', space=vmem, size = 0x9000, scoped, tag = 'internal scratch']
  %s0 = inlined_call_operand.vmem [shape: f32[4,25,288], index: 0, kind: input, shape index: {}]
  %s1 = inlined_call_operand.vmem [shape: f32[10,25], index: 1, kind: input, shape index: {}]
  %s2 = inlined_call_operand.vmem [shape: f32[10,1], index: 2, kind: input, shape index: {}]
  %s3 = inlined_call_operand.vmem [shape: f32[10,288], index: 3, kind: output, shape index: {}]
  %s4 = sld [smem:[#allocation0]]
  $region22: #{net_forward.3} parent=0
    _
  %s6 = ssub.s32 1, %s4
  %s7 = scalar_select 0, %s6, %s4
  // Predicated region
  $region2: #{net_forward.3} parent=0 // pred_check
    _
  $region3: #{net_forward.3} parent=0 // pred_check_branch
    %9 = sbr.rel (0) target = $region5
  $region4: #{net_forward.3} parent=0 // pred_region
    _
  $region5: #{net_forward.3} parent=0 // pred_fallthru
    _
  // Predicated region
  $region6: #{net_forward.3} parent=0 // pred_check
    _
  $region7: #{net_forward.3} parent=0 // pred_check_branch
    %11 = sbr.rel (0) target = $region9
  $region8: #{net_forward.3} parent=0 // pred_region
    _
  $region9: #{net_forward.3} parent=0 // pred_fallthru
    _
  // Predicated region
  $region10: #{net_forward.3} parent=0 // pred_check
    _
  $region11: #{net_forward.3} parent=0 // pred_check_branch
    %13 = sbr.rel (0) target = $region13
  $region12: #{net_forward.3} parent=0 // pred_region
    _
  $region13: #{net_forward.3} parent=0 // pred_fallthru
    _
  %v14 = vld [vmem:[%s1] sm:$0xff]
  %v15 = vld [vmem:[%s1 + $0x8] sm:$0x3]
  %v16 = vld [vmem:[%s0] sm:$0xff]
  %v17 = vld [vmem:[%s0 + $0x8] sm:$0xff]
  %v18 = vld [vmem:[%s0 + $0x10] sm:$0xff]
  %v19 = vld [vmem:[%s0 + $0x18] sm:$0xff]
  %v20 = vld [vmem:[%s0 + $0x20] sm:$0xff]
  %v21 = vld [vmem:[%s0 + $0x28] sm:$0xff]
  %v22 = vld [vmem:[%s0 + $0x30] sm:$0xff]
  %v23 = vld [vmem:[%s0 + $0x38] sm:$0xff]
  %v24 = vld [vmem:[%s0 + $0x40] sm:$0xff]
  %v25 = vld [vmem:[%s0 + $0x48] sm:$0x1]
  %v26 = vld [vmem:[%s0 + $0x50] sm:$0x1]
  %v27 = vld [vmem:[%s0 + $0x58] sm:$0x1]
  %vm28 = vcmask 203776
  %v30 = vsel %vm28, %v14, 0
  %v33 = vsel %vm28, %v15, 0
  %vm35 = vcmask 1040384
  %v37 = vsel %vm35, %v25, 0
  %v40 = vsel %vm35, %v26, 0
  %v43 = vsel %vm35, %v27, 0
  %45 = vmatpush.msra.mxu0 0.0
  %46 = vmatpush.msra.mxu0 0.0
  %47 = vmatpush.msra.mxu0 0.0
  %48 = vmatpush.msra.mxu0 0.0
  %49 = vmatpush.msra.mxu0 0.0
  %50 = vmatpush.msra.mxu0 0.0
  %51 = vmatpush.msra.mxu0 0.0
  %52 = vmatpush.msra.mxu0 0.0
  %53 = vmatpush.msra.mxu0 0.0
  %54 = vmatpush.msra.mxu0 0.0
  %55 = vmatpush.msra.mxu0 0.0
  %56 = vmatpush.msra.mxu0 0.0
  %57 = vmatpush.msra.mxu0 %v37
  %58 = vmatpush.msra.mxu0 %v22
  %59 = vmatpush.msra.mxu0 %v19
  %60 = vmatpush.msra.mxu0 %v16
  %61 = vmatmul.f32.gmra.mxu0 %v30
  %v62 = vpop.f32.mrf.mxu0
  %v63 = vadd.f32 0.0, %v62
  %64 = vmatmul.f32.gmra.mxu0 %v33
  %v65 = vpop.f32.mrf.mxu0
  %v66 = vadd.f32 0.0, %v65
  %67 = vdwg.mxu0
  %68 = vmatpush.msra.mxu0 0.0
  %69 = vmatpush.msra.mxu0 0.0
  %70 = vmatpush.msra.mxu0 0.0
  %71 = vmatpush.msra.mxu0 0.0
  %72 = vmatpush.msra.mxu0 0.0
  %73 = vmatpush.msra.mxu0 0.0
  %74 = vmatpush.msra.mxu0 0.0
  %75 = vmatpush.msra.mxu0 0.0
  %76 = vmatpush.msra.mxu0 0.0
  %77 = vmatpush.msra.mxu0 0.0
  %78 = vmatpush.msra.mxu0 0.0
  %79 = vmatpush.msra.mxu0 0.0
  %80 = vmatpush.msra.mxu0 %v40
  %81 = vmatpush.msra.mxu0 %v23
  %82 = vmatpush.msra.mxu0 %v20
  %83 = vmatpush.msra.mxu0 %v17
  %84 = vmatmul.f32.gmra.mxu0 %v30
  %v85 = vpop.f32.mrf.mxu0
  %v86 = vadd.f32 0.0, %v85
  %87 = vmatmul.f32.gmra.mxu0 %v33
  %v88 = vpop.f32.mrf.mxu0
  %v89 = vadd.f32 0.0, %v88
  %90 = vdwg.mxu0
  %91 = vmatpush.msra.mxu0 0.0
  %92 = vmatpush.msra.mxu0 0.0
  %93 = vmatpush.msra.mxu0 0.0
  %94 = vmatpush.msra.mxu0 0.0
  %95 = vmatpush.msra.mxu0 0.0
  %96 = vmatpush.msra.mxu0 0.0
  %97 = vmatpush.msra.mxu0 0.0
  %98 = vmatpush.msra.mxu0 0.0
  %99 = vmatpush.msra.mxu0 0.0
  %100 = vmatpush.msra.mxu0 0.0
  %101 = vmatpush.msra.mxu0 0.0
  %102 = vmatpush.msra.mxu0 0.0
  %103 = vmatpush.msra.mxu0 %v43
  %104 = vmatpush.msra.mxu0 %v24
  %105 = vmatpush.msra.mxu0 %v21
  %106 = vmatpush.msra.mxu0 %v18
  %107 = vmatmul.f32.gmra.mxu0 %v30
  %v108 = vpop.f32.mrf.mxu0
  %v109 = vadd.f32 0.0, %v108
  %110 = vmatmul.f32.gmra.mxu0 %v33
  %v111 = vpop.f32.mrf.mxu0
  %v112 = vadd.f32 0.0, %v111
  %113 = vdwg.mxu0
  %s114 = scalar_lea.vmem %s0, 96
  %v115 = vld [vmem:[%s114] sm:$0xff]
  %v116 = vld [vmem:[%s114 + $0x8] sm:$0xff]
  %v117 = vld [vmem:[%s114 + $0x10] sm:$0xff]
  %v118 = vld [vmem:[%s114 + $0x18] sm:$0xff]
  %v119 = vld [vmem:[%s114 + $0x20] sm:$0xff]
  %v120 = vld [vmem:[%s114 + $0x28] sm:$0xff]
  %v121 = vld [vmem:[%s114 + $0x30] sm:$0xff]
  %v122 = vld [vmem:[%s114 + $0x38] sm:$0xff]
  %v123 = vld [vmem:[%s114 + $0x40] sm:$0xff]
  %v124 = vld [vmem:[%s114 + $0x48] sm:$0x1]
  %v125 = vld [vmem:[%s114 + $0x50] sm:$0x1]
  %v126 = vld [vmem:[%s114 + $0x58] sm:$0x1]
  %v128 = vsel %vm35, %v124, 0
  %v131 = vsel %vm35, %v125, 0
  %v134 = vsel %vm35, %v126, 0
  %136 = vmatpush.msra.mxu0 0.0
  %137 = vmatpush.msra.mxu0 0.0
  %138 = vmatpush.msra.mxu0 0.0
  %139 = vmatpush.msra.mxu0 0.0
  %140 = vmatpush.msra.mxu0 0.0
  %141 = vmatpush.msra.mxu0 0.0
  %142 = vmatpush.msra.mxu0 0.0
  %143 = vmatpush.msra.mxu0 0.0
  %144 = vmatpush.msra.mxu0 0.0
  %145 = vmatpush.msra.mxu0 0.0
  %146 = vmatpush.msra.mxu0 0.0
  %147 = vmatpush.msra.mxu0 0.0
  %148 = vmatpush.msra.mxu0 %v128
  %149 = vmatpush.msra.mxu0 %v121
  %150 = vmatpush.msra.mxu0 %v118
  %151 = vmatpush.msra.mxu0 %v115
  %152 = vmatmul.f32.gmra.mxu0 %v30
  %v153 = vpop.f32.mrf.mxu0
  %v154 = vadd.f32 0.0, %v153
  %155 = vmatmul.f32.gmra.mxu0 %v33
  %v156 = vpop.f32.mrf.mxu0
  %v157 = vadd.f32 0.0, %v156
  %158 = vdwg.mxu0
  %159 = vmatpush.msra.mxu0 0.0
  %160 = vmatpush.msra.mxu0 0.0
  %161 = vmatpush.msra.mxu0 0.0
  %162 = vmatpush.msra.mxu0 0.0
  %163 = vmatpush.msra.mxu0 0.0
  %164 = vmatpush.msra.mxu0 0.0
  %165 = vmatpush.msra.mxu0 0.0
  %166 = vmatpush.msra.mxu0 0.0
  %167 = vmatpush.msra.mxu0 0.0
  %168 = vmatpush.msra.mxu0 0.0
  %169 = vmatpush.msra.mxu0 0.0
  %170 = vmatpush.msra.mxu0 0.0
  %171 = vmatpush.msra.mxu0 %v131
  %172 = vmatpush.msra.mxu0 %v122
  %173 = vmatpush.msra.mxu0 %v119
  %174 = vmatpush.msra.mxu0 %v116
  %175 = vmatmul.f32.gmra.mxu0 %v30
  %v176 = vpop.f32.mrf.mxu0
  %v177 = vadd.f32 0.0, %v176
  %178 = vmatmul.f32.gmra.mxu0 %v33
  %v179 = vpop.f32.mrf.mxu0
  %v180 = vadd.f32 0.0, %v179
  %181 = vdwg.mxu0
  %182 = vmatpush.msra.mxu0 0.0
  %183 = vmatpush.msra.mxu0 0.0
  %184 = vmatpush.msra.mxu0 0.0
  %185 = vmatpush.msra.mxu0 0.0
  %186 = vmatpush.msra.mxu0 0.0
  %187 = vmatpush.msra.mxu0 0.0
  %188 = vmatpush.msra.mxu0 0.0
  %189 = vmatpush.msra.mxu0 0.0
  %190 = vmatpush.msra.mxu0 0.0
  %191 = vmatpush.msra.mxu0 0.0
  %192 = vmatpush.msra.mxu0 0.0
  %193 = vmatpush.msra.mxu0 0.0
  %194 = vmatpush.msra.mxu0 %v134
  %195 = vmatpush.msra.mxu0 %v123
  %196 = vmatpush.msra.mxu0 %v120
  %197 = vmatpush.msra.mxu0 %v117
  %198 = vmatmul.f32.gmra.mxu0 %v30
  %v199 = vpop.f32.mrf.mxu0
  %v200 = vadd.f32 0.0, %v199
  %201 = vmatmul.f32.gmra.mxu0 %v33
  %v202 = vpop.f32.mrf.mxu0
  %v203 = vadd.f32 0.0, %v202
  %204 = vdwg.mxu0
  %v205 = vmax.f32 %v63, %v154
  %v206 = vmax.f32 %v86, %v177
  %v207 = vmax.f32 %v109, %v200
  %v208 = vmax.f32 %v66, %v157
  %v209 = vmax.f32 %v89, %v180
  %v210 = vmax.f32 %v112, %v203
  %s211 = scalar_lea.vmem %s0, 192
  %v212 = vld [vmem:[%s211] sm:$0xff]
  %v213 = vld [vmem:[%s211 + $0x8] sm:$0xff]
  %v214 = vld [vmem:[%s211 + $0x10] sm:$0xff]
  %v215 = vld [vmem:[%s211 + $0x18] sm:$0xff]
  %v216 = vld [vmem:[%s211 + $0x20] sm:$0xff]
  %v217 = vld [vmem:[%s211 + $0x28] sm:$0xff]
  %v218 = vld [vmem:[%s211 + $0x30] sm:$0xff]
  %v219 = vld [vmem:[%s211 + $0x38] sm:$0xff]
  %v220 = vld [vmem:[%s211 + $0x40] sm:$0xff]
  %v221 = vld [vmem:[%s211 + $0x48] sm:$0x1]
  %v222 = vld [vmem:[%s211 + $0x50] sm:$0x1]
  %v223 = vld [vmem:[%s211 + $0x58] sm:$0x1]
  %v225 = vsel %vm35, %v221, 0
  %v228 = vsel %vm35, %v222, 0
  %v231 = vsel %vm35, %v223, 0
  %233 = vmatpush.msra.mxu0 0.0
  %234 = vmatpush.msra.mxu0 0.0
  %235 = vmatpush.msra.mxu0 0.0
  %236 = vmatpush.msra.mxu0 0.0
  %237 = vmatpush.msra.mxu0 0.0
  %238 = vmatpush.msra.mxu0 0.0
  %239 = vmatpush.msra.mxu0 0.0
  %240 = vmatpush.msra.mxu0 0.0
  %241 = vmatpush.msra.mxu0 0.0
  %242 = vmatpush.msra.mxu0 0.0
  %243 = vmatpush.msra.mxu0 0.0
  %244 = vmatpush.msra.mxu0 0.0
  %245 = vmatpush.msra.mxu0 %v225
  %246 = vmatpush.msra.mxu0 %v218
  %247 = vmatpush.msra.mxu0 %v215
  %248 = vmatpush.msra.mxu0 %v212
  %249 = vmatmul.f32.gmra.mxu0 %v30
  %v250 = vpop.f32.mrf.mxu0
  %v251 = vadd.f32 0.0, %v250
  %252 = vmatmul.f32.gmra.mxu0 %v33
  %v253 = vpop.f32.mrf.mxu0
  %v254 = vadd.f32 0.0, %v253
  %255 = vdwg.mxu0
  %256 = vmatpush.msra.mxu0 0.0
  %257 = vmatpush.msra.mxu0 0.0
  %258 = vmatpush.msra.mxu0 0.0
  %259 = vmatpush.msra.mxu0 0.0
  %260 = vmatpush.msra.mxu0 0.0
  %261 = vmatpush.msra.mxu0 0.0
  %262 = vmatpush.msra.mxu0 0.0
  %263 = vmatpush.msra.mxu0 0.0
  %264 = vmatpush.msra.mxu0 0.0
  %265 = vmatpush.msra.mxu0 0.0
  %266 = vmatpush.msra.mxu0 0.0
  %267 = vmatpush.msra.mxu0 0.0
  %268 = vmatpush.msra.mxu0 %v228
  %269 = vmatpush.msra.mxu0 %v219
  %270 = vmatpush.msra.mxu0 %v216
  %271 = vmatpush.msra.mxu0 %v213
  %272 = vmatmul.f32.gmra.mxu0 %v30
  %v273 = vpop.f32.mrf.mxu0
  %v274 = vadd.f32 0.0, %v273
  %275 = vmatmul.f32.gmra.mxu0 %v33
  %v276 = vpop.f32.mrf.mxu0
  %v277 = vadd.f32 0.0, %v276
  %278 = vdwg.mxu0
  %279 = vmatpush.msra.mxu0 0.0
  %280 = vmatpush.msra.mxu0 0.0
  %281 = vmatpush.msra.mxu0 0.0
  %282 = vmatpush.msra.mxu0 0.0
  %283 = vmatpush.msra.mxu0 0.0
  %284 = vmatpush.msra.mxu0 0.0
  %285 = vmatpush.msra.mxu0 0.0
  %286 = vmatpush.msra.mxu0 0.0
  %287 = vmatpush.msra.mxu0 0.0
  %288 = vmatpush.msra.mxu0 0.0
  %289 = vmatpush.msra.mxu0 0.0
  %290 = vmatpush.msra.mxu0 0.0
  %291 = vmatpush.msra.mxu0 %v231
  %292 = vmatpush.msra.mxu0 %v220
  %293 = vmatpush.msra.mxu0 %v217
  %294 = vmatpush.msra.mxu0 %v214
  %295 = vmatmul.f32.gmra.mxu0 %v30
  %v296 = vpop.f32.mrf.mxu0
  %v297 = vadd.f32 0.0, %v296
  %298 = vmatmul.f32.gmra.mxu0 %v33
  %v299 = vpop.f32.mrf.mxu0
  %v300 = vadd.f32 0.0, %v299
  %301 = vdwg.mxu0
  %v302 = vmax.f32 %v205, %v251
  %v303 = vmax.f32 %v206, %v274
  %v304 = vmax.f32 %v207, %v297
  %v305 = vmax.f32 %v208, %v254
  %v306 = vmax.f32 %v209, %v277
  %v307 = vmax.f32 %v210, %v300
  %s308 = scalar_lea.vmem %s0, 288
  %v309 = vld [vmem:[%s308] sm:$0xff]
  %v310 = vld [vmem:[%s308 + $0x8] sm:$0xff]
  %v311 = vld [vmem:[%s308 + $0x10] sm:$0xff]
  %v312 = vld [vmem:[%s308 + $0x18] sm:$0xff]
  %v313 = vld [vmem:[%s308 + $0x20] sm:$0xff]
  %v314 = vld [vmem:[%s308 + $0x28] sm:$0xff]
  %v315 = vld [vmem:[%s308 + $0x30] sm:$0xff]
  %v316 = vld [vmem:[%s308 + $0x38] sm:$0xff]
  %v317 = vld [vmem:[%s308 + $0x40] sm:$0xff]
  %v318 = vld [vmem:[%s308 + $0x48] sm:$0x1]
  %v319 = vld [vmem:[%s308 + $0x50] sm:$0x1]
  %v320 = vld [vmem:[%s308 + $0x58] sm:$0x1]
  %v322 = vsel %vm35, %v318, 0
  %v325 = vsel %vm35, %v319, 0
  %v328 = vsel %vm35, %v320, 0
  %330 = vmatpush.msra.mxu0 0.0
  %331 = vmatpush.msra.mxu0 0.0
  %332 = vmatpush.msra.mxu0 0.0
  %333 = vmatpush.msra.mxu0 0.0
  %334 = vmatpush.msra.mxu0 0.0
  %335 = vmatpush.msra.mxu0 0.0
  %336 = vmatpush.msra.mxu0 0.0
  %337 = vmatpush.msra.mxu0 0.0
  %338 = vmatpush.msra.mxu0 0.0
  %339 = vmatpush.msra.mxu0 0.0
  %340 = vmatpush.msra.mxu0 0.0
  %341 = vmatpush.msra.mxu0 0.0
  %342 = vmatpush.msra.mxu0 %v322
  %343 = vmatpush.msra.mxu0 %v315
  %344 = vmatpush.msra.mxu0 %v312
  %345 = vmatpush.msra.mxu0 %v309
  %346 = vmatmul.f32.gmra.mxu0 %v30
  %v347 = vpop.f32.mrf.mxu0
  %v348 = vadd.f32 0.0, %v347
  %349 = vmatmul.f32.gmra.mxu0 %v33
  %v350 = vpop.f32.mrf.mxu0
  %v351 = vadd.f32 0.0, %v350
  %352 = vdwg.mxu0
  %353 = vmatpush.msra.mxu0 0.0
  %354 = vmatpush.msra.mxu0 0.0
  %355 = vmatpush.msra.mxu0 0.0
  %356 = vmatpush.msra.mxu0 0.0
  %357 = vmatpush.msra.mxu0 0.0
  %358 = vmatpush.msra.mxu0 0.0
  %359 = vmatpush.msra.mxu0 0.0
  %360 = vmatpush.msra.mxu0 0.0
  %361 = vmatpush.msra.mxu0 0.0
  %362 = vmatpush.msra.mxu0 0.0
  %363 = vmatpush.msra.mxu0 0.0
  %364 = vmatpush.msra.mxu0 0.0
  %365 = vmatpush.msra.mxu0 %v325
  %366 = vmatpush.msra.mxu0 %v316
  %367 = vmatpush.msra.mxu0 %v313
  %368 = vmatpush.msra.mxu0 %v310
  %369 = vmatmul.f32.gmra.mxu0 %v30
  %v370 = vpop.f32.mrf.mxu0
  %v371 = vadd.f32 0.0, %v370
  %372 = vmatmul.f32.gmra.mxu0 %v33
  %v373 = vpop.f32.mrf.mxu0
  %v374 = vadd.f32 0.0, %v373
  %375 = vdwg.mxu0
  %376 = vmatpush.msra.mxu0 0.0
  %377 = vmatpush.msra.mxu0 0.0
  %378 = vmatpush.msra.mxu0 0.0
  %379 = vmatpush.msra.mxu0 0.0
  %380 = vmatpush.msra.mxu0 0.0
  %381 = vmatpush.msra.mxu0 0.0
  %382 = vmatpush.msra.mxu0 0.0
  %383 = vmatpush.msra.mxu0 0.0
  %384 = vmatpush.msra.mxu0 0.0
  %385 = vmatpush.msra.mxu0 0.0
  %386 = vmatpush.msra.mxu0 0.0
  %387 = vmatpush.msra.mxu0 0.0
  %388 = vmatpush.msra.mxu0 %v328
  %389 = vmatpush.msra.mxu0 %v317
  %390 = vmatpush.msra.mxu0 %v314
  %391 = vmatpush.msra.mxu0 %v311
  %392 = vmatmul.f32.gmra.mxu0 %v30
  %v393 = vpop.f32.mrf.mxu0
  %v394 = vadd.f32 0.0, %v393
  %395 = vmatmul.f32.gmra.mxu0 %v33
  %v396 = vpop.f32.mrf.mxu0
  %v397 = vadd.f32 0.0, %v396
  %398 = vdwg.mxu0
  %v399 = vmax.f32 %v302, %v348
  %v400 = vmax.f32 %v303, %v371
  %v401 = vmax.f32 %v304, %v394
  %v402 = vmax.f32 %v305, %v351
  %v403 = vmax.f32 %v306, %v374
  %v404 = vmax.f32 %v307, %v397
  %v405 = vld [vmem:[%s2] sm:$0xff]
  %v406 = vld [vmem:[%s2 + $0x8] sm:$0x3]
  %408 = vset.pattern.permute.xlu0 0
  %409 = vperm.xlu0 %408, %v405
  %v410 = vpop.permute.xlu0 %409
  %413 = vset.pattern.permute.xlu0 0
  %414 = vperm.xlu0 %413, %v406
  %v415 = vpop.permute.xlu0 %414
  %v417 = vadd.f32 %v399, %v410
  %v418 = vadd.f32 %v400, %v410
  %v419 = vadd.f32 %v401, %v410
  %v420 = vadd.f32 %v402, %v415
  %v421 = vadd.f32 %v403, %v415
  %v422 = vadd.f32 %v404, %v415
  %v423 = vmax.f32 %v417, 0.0
  %v424 = vmax.f32 %v418, 0.0
  %v425 = vmax.f32 %v419, 0.0
  %v426 = vmax.f32 %v420, 0.0
  %v427 = vmax.f32 %v421, 0.0
  %v428 = vmax.f32 %v422, 0.0
  %429 = vst [vmem:[%s3] sm:$0xff] %v423
  %430 = vst [vmem:[%s3 + $0x8] sm:$0xff] %v424
  %vm431 = vcmask 261120
  %432 = vst.msk [vmem:[%s3 + $0x10] sm:$0xff] %vm431, %v425
  %433 = vst [vmem:[%s3 + $0x18] sm:$0x3] %v426
  %434 = vst [vmem:[%s3 + $0x20] sm:$0x3] %v427
  %vm435 = vcmask 254976
  %436 = vst.msk [vmem:[%s3 + $0x28] sm:$0x3] %vm435, %v428
  // Predicated region
  $region14: #{net_forward.3} parent=0 // pred_check
    _
  $region15: #{net_forward.3} parent=0 // pred_check_branch
    %438 = sbr.rel (0) target = $region17
  $region16: #{net_forward.3} parent=0 // pred_region
    _
  $region17: #{net_forward.3} parent=0 // pred_fallthru
    _
  // Predicated region
  $region18: #{net_forward.3} parent=0 // pred_check
    _
  $region19: #{net_forward.3} parent=0 // pred_check_branch
    %440 = sbr.rel (0) target = $region21
  $region20: #{net_forward.3} parent=0 // pred_region
    _
  $region21: #{net_forward.3} parent=0 // pred_fallthru
    _

// kernel: net_forward.4
$region0: #{net_forward.4}
  #allocation0 [shape = 'u32[]', space=smem, size = 0x4, offset = 0x4, fixed_abs, tag = 'smem constant byte address 0x4 - core index']
  #allocation1 [shape = 'u32[72,128]{1,0:T(1,128)}', space=vmem, size = 0x9000, scoped, tag = 'internal scratch']
  %s0 = inlined_call_operand.vmem [shape: f32[4,250,32], index: 0, kind: input, shape index: {}]
  %s1 = inlined_call_operand.vmem [shape: f32[20,250], index: 1, kind: input, shape index: {}]
  %s2 = inlined_call_operand.vmem [shape: f32[20,1], index: 2, kind: input, shape index: {}]
  %s3 = inlined_call_operand.vmem [shape: f32[20,32], index: 3, kind: output, shape index: {}]
  %s4 = sld [smem:[#allocation0]]
  $region22: #{net_forward.4} parent=0
    _
  %s6 = ssub.s32 1, %s4
  %s7 = scalar_select 0, %s6, %s4
  // Predicated region
  $region2: #{net_forward.4} parent=0 // pred_check
    _
  $region3: #{net_forward.4} parent=0 // pred_check_branch
    %9 = sbr.rel (0) target = $region5
  $region4: #{net_forward.4} parent=0 // pred_region
    _
  $region5: #{net_forward.4} parent=0 // pred_fallthru
    _
  // Predicated region
  $region6: #{net_forward.4} parent=0 // pred_check
    _
  $region7: #{net_forward.4} parent=0 // pred_check_branch
    %11 = sbr.rel (0) target = $region9
  $region8: #{net_forward.4} parent=0 // pred_region
    _
  $region9: #{net_forward.4} parent=0 // pred_fallthru
    _
  // Predicated region
  $region10: #{net_forward.4} parent=0 // pred_check
    _
  $region11: #{net_forward.4} parent=0 // pred_check_branch
    %13 = sbr.rel (0) target = $region13
  $region12: #{net_forward.4} parent=0 // pred_region
    _
  $region13: #{net_forward.4} parent=0 // pred_fallthru
    _
  %v14 = vld [vmem:[%s1] sm:$0xff]
  %v15 = vld [vmem:[%s1 + $0x8] sm:$0xff]
  %v16 = vld [vmem:[%s1 + $0x10] sm:$0xff]
  %v17 = vld [vmem:[%s1 + $0x18] sm:$0xff]
  %v18 = vld [vmem:[%s1 + $0x20] sm:$0xf]
  %v19 = vld [vmem:[%s1 + $0x28] sm:$0xf]
  %v20 = vld [vmem:[%s0] sm:$0xff]
  %v21 = vld [vmem:[%s0 + $0x8] sm:$0xff]
  %v22 = vld [vmem:[%s0 + $0x10] sm:$0xff]
  %v23 = vld [vmem:[%s0 + $0x18] sm:$0xff]
  %v24 = vld [vmem:[%s0 + $0x20] sm:$0xff]
  %v25 = vld [vmem:[%s0 + $0x28] sm:$0xff]
  %v26 = vld [vmem:[%s0 + $0x30] sm:$0xff]
  %v27 = vld [vmem:[%s0 + $0x38] sm:$0xff]
  %v28 = vld [vmem:[%s0 + $0x40] sm:$0xff]
  %v29 = vld [vmem:[%s0 + $0x48] sm:$0xff]
  %v30 = vld [vmem:[%s0 + $0x50] sm:$0xff]
  %v31 = vld [vmem:[%s0 + $0x58] sm:$0xff]
  %v32 = vld [vmem:[%s0 + $0x60] sm:$0xff]
  %v33 = vld [vmem:[%s0 + $0x68] sm:$0xff]
  %v34 = vld [vmem:[%s0 + $0x70] sm:$0xff]
  %v35 = vld [vmem:[%s0 + $0x78] sm:$0xff]
  %v36 = vld [vmem:[%s0 + $0x80] sm:$0xff]
  %v37 = vld [vmem:[%s0 + $0x88] sm:$0xff]
  %v38 = vld [vmem:[%s0 + $0x90] sm:$0xff]
  %v39 = vld [vmem:[%s0 + $0x98] sm:$0xff]
  %v40 = vld [vmem:[%s0 + $0xa0] sm:$0xff]
  %v41 = vld [vmem:[%s0 + $0xa8] sm:$0xff]
  %v42 = vld [vmem:[%s0 + $0xb0] sm:$0xff]
  %v43 = vld [vmem:[%s0 + $0xb8] sm:$0xff]
  %v44 = vld [vmem:[%s0 + $0xc0] sm:$0xff]
  %v45 = vld [vmem:[%s0 + $0xc8] sm:$0xff]
  %v46 = vld [vmem:[%s0 + $0xd0] sm:$0xff]
  %v47 = vld [vmem:[%s0 + $0xd8] sm:$0xff]
  %v48 = vld [vmem:[%s0 + $0xe0] sm:$0xff]
  %v49 = vld [vmem:[%s0 + $0xe8] sm:$0xff]
  %v50 = vld [vmem:[%s0 + $0xf0] sm:$0xff]
  %v51 = vld [vmem:[%s0 + $0xf8] sm:$0x3]
  %vm52 = vcmask 998400
  %v54 = vsel %vm52, %v15, 0
  %v57 = vsel %vm52, %v17, 0
  %v60 = vsel %vm52, %v19, 0
  %vm62 = vcmask 1041408
  %v64 = vsel %vm62, %v51, 0
  %66 = vmatpush.msra.mxu0 %v35
  %67 = vmatpush.msra.mxu0 %v34
  %68 = vmatpush.msra.mxu0 %v33
  %69 = vmatpush.msra.mxu0 %v32
  %70 = vmatpush.msra.mxu0 %v31
  %71 = vmatpush.msra.mxu0 %v30
  %72 = vmatpush.msra.mxu0 %v29
  %73 = vmatpush.msra.mxu0 %v28
  %74 = vmatpush.msra.mxu0 %v27
  %75 = vmatpush.msra.mxu0 %v26
  %76 = vmatpush.msra.mxu0 %v25
  %77 = vmatpush.msra.mxu0 %v24
  %78 = vmatpush.msra.mxu0 %v23
  %79 = vmatpush.msra.mxu0 %v22
  %80 = vmatpush.msra.mxu0 %v21
  %81 = vmatpush.msra.mxu0 %v20
  %82 = vmatmul.f32.gmra.mxu0 %v14
  %v83 = vpop.f32.mrf.mxu0
  %v84 = vadd.f32 0.0, %v83
  %85 = vmatmul.f32.gmra.mxu0 %v16
  %v86 = vpop.f32.mrf.mxu0
  %v87 = vadd.f32 0.0, %v86
  %88 = vmatmul.f32.gmra.mxu0 %v18
  %v89 = vpop.f32.mrf.mxu0
  %v90 = vadd.f32 0.0, %v89
  %91 = vdwg.mxu0
  %92 = vmatpush.msra.mxu0 %v64
  %93 = vmatpush.msra.mxu0 %v50
  %94 = vmatpush.msra.mxu0 %v49
  %95 = vmatpush.msra.mxu0 %v48
  %96 = vmatpush.msra.mxu0 %v47
  %97 = vmatpush.msra.mxu0 %v46
  %98 = vmatpush.msra.mxu0 %v45
  %99 = vmatpush.msra.mxu0 %v44
  %100 = vmatpush.msra.mxu0 %v43
  %101 = vmatpush.msra.mxu0 %v42
  %102 = vmatpush.msra.mxu0 %v41
  %103 = vmatpush.msra.mxu0 %v40
  %104 = vmatpush.msra.mxu0 %v39
  %105 = vmatpush.msra.mxu0 %v38
  %106 = vmatpush.msra.mxu0 %v37
  %107 = vmatpush.msra.mxu0 %v36
  %108 = vmatmul.f32.gmra.mxu0 %v54
  %v109 = vpop.f32.mrf.mxu0
  %v110 = vadd.f32 %v84, %v109
  %111 = vmatmul.f32.gmra.mxu0 %v57
  %v112 = vpop.f32.mrf.mxu0
  %v113 = vadd.f32 %v87, %v112
  %114 = vmatmul.f32.gmra.mxu0 %v60
  %v115 = vpop.f32.mrf.mxu0
  %v116 = vadd.f32 %v90, %v115
  %117 = vdwg.mxu0
  %s118 = scalar_lea.vmem %s0, 256
  %v119 = vld [vmem:[%s118] sm:$0xff]
  %v120 = vld [vmem:[%s118 + $0x8] sm:$0xff]
  %v121 = vld [vmem:[%s118 + $0x10] sm:$0xff]
  %v122 = vld [vmem:[%s118 + $0x18] sm:$0xff]
  %v123 = vld [vmem:[%s118 + $0x20] sm:$0xff]
  %v124 = vld [vmem:[%s118 + $0x28] sm:$0xff]
  %v125 = vld [vmem:[%s118 + $0x30] sm:$0xff]
  %v126 = vld [vmem:[%s118 + $0x38] sm:$0xff]
  %v127 = vld [vmem:[%s118 + $0x40] sm:$0xff]
  %v128 = vld [vmem:[%s118 + $0x48] sm:$0xff]
  %v129 = vld [vmem:[%s118 + $0x50] sm:$0xff]
  %v130 = vld [vmem:[%s118 + $0x58] sm:$0xff]
  %v131 = vld [vmem:[%s118 + $0x60] sm:$0xff]
  %v132 = vld [vmem:[%s118 + $0x68] sm:$0xff]
  %v133 = vld [vmem:[%s118 + $0x70] sm:$0xff]
  %v134 = vld [vmem:[%s118 + $0x78] sm:$0xff]
  %v135 = vld [vmem:[%s118 + $0x80] sm:$0xff]
  %v136 = vld [vmem:[%s118 + $0x88] sm:$0xff]
  %v137 = vld [vmem:[%s118 + $0x90] sm:$0xff]
  %v138 = vld [vmem:[%s118 + $0x98] sm:$0xff]
  %v139 = vld [vmem:[%s118 + $0xa0] sm:$0xff]
  %v140 = vld [vmem:[%s118 + $0xa8] sm:$0xff]
  %v141 = vld [vmem:[%s118 + $0xb0] sm:$0xff]
  %v142 = vld [vmem:[%s118 + $0xb8] sm:$0xff]
  %v143 = vld [vmem:[%s118 + $0xc0] sm:$0xff]
  %v144 = vld [vmem:[%s118 + $0xc8] sm:$0xff]
  %v145 = vld [vmem:[%s118 + $0xd0] sm:$0xff]
  %v146 = vld [vmem:[%s118 + $0xd8] sm:$0xff]
  %v147 = vld [vmem:[%s118 + $0xe0] sm:$0xff]
  %v148 = vld [vmem:[%s118 + $0xe8] sm:$0xff]
  %v149 = vld [vmem:[%s118 + $0xf0] sm:$0xff]
  %v150 = vld [vmem:[%s118 + $0xf8] sm:$0x3]
  %v152 = vsel %vm62, %v150, 0
  %154 = vmatpush.msra.mxu0 %v134
  %155 = vmatpush.msra.mxu0 %v133
  %156 = vmatpush.msra.mxu0 %v132
  %157 = vmatpush.msra.mxu0 %v131
  %158 = vmatpush.msra.mxu0 %v130
  %159 = vmatpush.msra.mxu0 %v129
  %160 = vmatpush.msra.mxu0 %v128
  %161 = vmatpush.msra.mxu0 %v127
  %162 = vmatpush.msra.mxu0 %v126
  %163 = vmatpush.msra.mxu0 %v125
  %164 = vmatpush.msra.mxu0 %v124
  %165 = vmatpush.msra.mxu0 %v123
  %166 = vmatpush.msra.mxu0 %v122
  %167 = vmatpush.msra.mxu0 %v121
  %168 = vmatpush.msra.mxu0 %v120
  %169 = vmatpush.msra.mxu0 %v119
  %170 = vmatmul.f32.gmra.mxu0 %v14
  %v171 = vpop.f32.mrf.mxu0
  %v172 = vadd.f32 0.0, %v171
  %173 = vmatmul.f32.gmra.mxu0 %v16
  %v174 = vpop.f32.mrf.mxu0
  %v175 = vadd.f32 0.0, %v174
  %176 = vmatmul.f32.gmra.mxu0 %v18
  %v177 = vpop.f32.mrf.mxu0
  %v178 = vadd.f32 0.0, %v177
  %179 = vdwg.mxu0
  %180 = vmatpush.msra.mxu0 %v152
  %181 = vmatpush.msra.mxu0 %v149
  %182 = vmatpush.msra.mxu0 %v148
  %183 = vmatpush.msra.mxu0 %v147
  %184 = vmatpush.msra.mxu0 %v146
  %185 = vmatpush.msra.mxu0 %v145
  %186 = vmatpush.msra.mxu0 %v144
  %187 = vmatpush.msra.mxu0 %v143
  %188 = vmatpush.msra.mxu0 %v142
  %189 = vmatpush.msra.mxu0 %v141
  %190 = vmatpush.msra.mxu0 %v140
  %191 = vmatpush.msra.mxu0 %v139
  %192 = vmatpush.msra.mxu0 %v138
  %193 = vmatpush.msra.mxu0 %v137
  %194 = vmatpush.msra.mxu0 %v136
  %195 = vmatpush.msra.mxu0 %v135
  %196 = vmatmul.f32.gmra.mxu0 %v54
  %v197 = vpop.f32.mrf.mxu0
  %v198 = vadd.f32 %v172, %v197
  %199 = vmatmul.f32.gmra.mxu0 %v57
  %v200 = vpop.f32.mrf.mxu0
  %v201 = vadd.f32 %v175, %v200
  %202 = vmatmul.f32.gmra.mxu0 %v60
  %v203 = vpop.f32.mrf.mxu0
  %v204 = vadd.f32 %v178, %v203
  %205 = vdwg.mxu0
  %v206 = vmax.f32 %v110, %v198
  %v207 = vmax.f32 %v113, %v201
  %v208 = vmax.f32 %v116, %v204
  %s209 = scalar_lea.vmem %s0, 512
  %v210 = vld [vmem:[%s209] sm:$0xff]
  %v211 = vld [vmem:[%s209 + $0x8] sm:$0xff]
  %v212 = vld [vmem:[%s209 + $0x10] sm:$0xff]
  %v213 = vld [vmem:[%s209 + $0x18] sm:$0xff]
  %v214 = vld [vmem:[%s209 + $0x20] sm:$0xff]
  %v215 = vld [vmem:[%s209 + $0x28] sm:$0xff]
  %v216 = vld [vmem:[%s209 + $0x30] sm:$0xff]
  %v217 = vld [vmem:[%s209 + $0x38] sm:$0xff]
  %v218 = vld [vmem:[%s209 + $0x40] sm:$0xff]
  %v219 = vld [vmem:[%s209 + $0x48] sm:$0xff]
  %v220 = vld [vmem:[%s209 + $0x50] sm:$0xff]
  %v221 = vld [vmem:[%s209 + $0x58] sm:$0xff]
  %v222 = vld [vmem:[%s209 + $0x60] sm:$0xff]
  %v223 = vld [vmem:[%s209 + $0x68] sm:$0xff]
  %v224 = vld [vmem:[%s209 + $0x70] sm:$0xff]
  %v225 = vld [vmem:[%s209 + $0x78] sm:$0xff]
  %v226 = vld [vmem:[%s209 + $0x80] sm:$0xff]
  %v227 = vld [vmem:[%s209 + $0x88] sm:$0xff]
  %v228 = vld [vmem:[%s209 + $0x90] sm:$0xff]
  %v229 = vld [vmem:[%s209 + $0x98] sm:$0xff]
  %v230 = vld [vmem:[%s209 + $0xa0] sm:$0xff]
  %v231 = vld [vmem:[%s209 + $0xa8] sm:$0xff]
  %v232 = vld [vmem:[%s209 + $0xb0] sm:$0xff]
  %v233 = vld [vmem:[%s209 + $0xb8] sm:$0xff]
  %v234 = vld [vmem:[%s209 + $0xc0] sm:$0xff]
  %v235 = vld [vmem:[%s209 + $0xc8] sm:$0xff]
  %v236 = vld [vmem:[%s209 + $0xd0] sm:$0xff]
  %v237 = vld [vmem:[%s209 + $0xd8] sm:$0xff]
  %v238 = vld [vmem:[%s209 + $0xe0] sm:$0xff]
  %v239 = vld [vmem:[%s209 + $0xe8] sm:$0xff]
  %v240 = vld [vmem:[%s209 + $0xf0] sm:$0xff]
  %v241 = vld [vmem:[%s209 + $0xf8] sm:$0x3]
  %v243 = vsel %vm62, %v241, 0
  %245 = vmatpush.msra.mxu0 %v225
  %246 = vmatpush.msra.mxu0 %v224
  %247 = vmatpush.msra.mxu0 %v223
  %248 = vmatpush.msra.mxu0 %v222
  %249 = vmatpush.msra.mxu0 %v221
  %250 = vmatpush.msra.mxu0 %v220
  %251 = vmatpush.msra.mxu0 %v219
  %252 = vmatpush.msra.mxu0 %v218
  %253 = vmatpush.msra.mxu0 %v217
  %254 = vmatpush.msra.mxu0 %v216
  %255 = vmatpush.msra.mxu0 %v215
  %256 = vmatpush.msra.mxu0 %v214
  %257 = vmatpush.msra.mxu0 %v213
  %258 = vmatpush.msra.mxu0 %v212
  %259 = vmatpush.msra.mxu0 %v211
  %260 = vmatpush.msra.mxu0 %v210
  %261 = vmatmul.f32.gmra.mxu0 %v14
  %v262 = vpop.f32.mrf.mxu0
  %v263 = vadd.f32 0.0, %v262
  %264 = vmatmul.f32.gmra.mxu0 %v16
  %v265 = vpop.f32.mrf.mxu0
  %v266 = vadd.f32 0.0, %v265
  %267 = vmatmul.f32.gmra.mxu0 %v18
  %v268 = vpop.f32.mrf.mxu0
  %v269 = vadd.f32 0.0, %v268
  %270 = vdwg.mxu0
  %271 = vmatpush.msra.mxu0 %v243
  %272 = vmatpush.msra.mxu0 %v240
  %273 = vmatpush.msra.mxu0 %v239
  %274 = vmatpush.msra.mxu0 %v238
  %275 = vmatpush.msra.mxu0 %v237
  %276 = vmatpush.msra.mxu0 %v236
  %277 = vmatpush.msra.mxu0 %v235
  %278 = vmatpush.msra.mxu0 %v234
  %279 = vmatpush.msra.mxu0 %v233
  %280 = vmatpush.msra.mxu0 %v232
  %281 = vmatpush.msra.mxu0 %v231
  %282 = vmatpush.msra.mxu0 %v230
  %283 = vmatpush.msra.mxu0 %v229
  %284 = vmatpush.msra.mxu0 %v228
  %285 = vmatpush.msra.mxu0 %v227
  %286 = vmatpush.msra.mxu0 %v226
  %287 = vmatmul.f32.gmra.mxu0 %v54
  %v288 = vpop.f32.mrf.mxu0
  %v289 = vadd.f32 %v263, %v288
  %290 = vmatmul.f32.gmra.mxu0 %v57
  %v291 = vpop.f32.mrf.mxu0
  %v292 = vadd.f32 %v266, %v291
  %293 = vmatmul.f32.gmra.mxu0 %v60
  %v294 = vpop.f32.mrf.mxu0
  %v295 = vadd.f32 %v269, %v294
  %296 = vdwg.mxu0
  %v297 = vmax.f32 %v206, %v289
  %v298 = vmax.f32 %v207, %v292
  %v299 = vmax.f32 %v208, %v295
  %s300 = scalar_lea.vmem %s0, 768
  %v301 = vld [vmem:[%s300] sm:$0xff]
  %v302 = vld [vmem:[%s300 + $0x8] sm:$0xff]
  %v303 = vld [vmem:[%s300 + $0x10] sm:$0xff]
  %v304 = vld [vmem:[%s300 + $0x18] sm:$0xff]
  %v305 = vld [vmem:[%s300 + $0x20] sm:$0xff]
  %v306 = vld [vmem:[%s300 + $0x28] sm:$0xff]
  %v307 = vld [vmem:[%s300 + $0x30] sm:$0xff]
  %v308 = vld [vmem:[%s300 + $0x38] sm:$0xff]
  %v309 = vld [vmem:[%s300 + $0x40] sm:$0xff]
  %v310 = vld [vmem:[%s300 + $0x48] sm:$0xff]
  %v311 = vld [vmem:[%s300 + $0x50] sm:$0xff]
  %v312 = vld [vmem:[%s300 + $0x58] sm:$0xff]
  %v313 = vld [vmem:[%s300 + $0x60] sm:$0xff]
  %v314 = vld [vmem:[%s300 + $0x68] sm:$0xff]
  %v315 = vld [vmem:[%s300 + $0x70] sm:$0xff]
  %v316 = vld [vmem:[%s300 + $0x78] sm:$0xff]
  %v317 = vld [vmem:[%s300 + $0x80] sm:$0xff]
  %v318 = vld [vmem:[%s300 + $0x88] sm:$0xff]
  %v319 = vld [vmem:[%s300 + $0x90] sm:$0xff]
  %v320 = vld [vmem:[%s300 + $0x98] sm:$0xff]
  %v321 = vld [vmem:[%s300 + $0xa0] sm:$0xff]
  %v322 = vld [vmem:[%s300 + $0xa8] sm:$0xff]
  %v323 = vld [vmem:[%s300 + $0xb0] sm:$0xff]
  %v324 = vld [vmem:[%s300 + $0xb8] sm:$0xff]
  %v325 = vld [vmem:[%s300 + $0xc0] sm:$0xff]
  %v326 = vld [vmem:[%s300 + $0xc8] sm:$0xff]
  %v327 = vld [vmem:[%s300 + $0xd0] sm:$0xff]
  %v328 = vld [vmem:[%s300 + $0xd8] sm:$0xff]
  %v329 = vld [vmem:[%s300 + $0xe0] sm:$0xff]
  %v330 = vld [vmem:[%s300 + $0xe8] sm:$0xff]
  %v331 = vld [vmem:[%s300 + $0xf0] sm:$0xff]
  %v332 = vld [vmem:[%s300 + $0xf8] sm:$0x3]
  %v334 = vsel %vm62, %v332, 0
  %336 = vmatpush.msra.mxu0 %v316
  %337 = vmatpush.msra.mxu0 %v315
  %338 = vmatpush.msra.mxu0 %v314
  %339 = vmatpush.msra.mxu0 %v313
  %340 = vmatpush.msra.mxu0 %v312
  %341 = vmatpush.msra.mxu0 %v311
  %342 = vmatpush.msra.mxu0 %v310
  %343 = vmatpush.msra.mxu0 %v309
  %344 = vmatpush.msra.mxu0 %v308
  %345 = vmatpush.msra.mxu0 %v307
  %346 = vmatpush.msra.mxu0 %v306
  %347 = vmatpush.msra.mxu0 %v305
  %348 = vmatpush.msra.mxu0 %v304
  %349 = vmatpush.msra.mxu0 %v303
  %350 = vmatpush.msra.mxu0 %v302
  %351 = vmatpush.msra.mxu0 %v301
  %352 = vmatmul.f32.gmra.mxu0 %v14
  %v353 = vpop.f32.mrf.mxu0
  %v354 = vadd.f32 0.0, %v353
  %355 = vmatmul.f32.gmra.mxu0 %v16
  %v356 = vpop.f32.mrf.mxu0
  %v357 = vadd.f32 0.0, %v356
  %358 = vmatmul.f32.gmra.mxu0 %v18
  %v359 = vpop.f32.mrf.mxu0
  %v360 = vadd.f32 0.0, %v359
  %361 = vdwg.mxu0
  %362 = vmatpush.msra.mxu0 %v334
  %363 = vmatpush.msra.mxu0 %v331
  %364 = vmatpush.msra.mxu0 %v330
  %365 = vmatpush.msra.mxu0 %v329
  %366 = vmatpush.msra.mxu0 %v328
  %367 = vmatpush.msra.mxu0 %v327
  %368 = vmatpush.msra.mxu0 %v326
  %369 = vmatpush.msra.mxu0 %v325
  %370 = vmatpush.msra.mxu0 %v324
  %371 = vmatpush.msra.mxu0 %v323
  %372 = vmatpush.msra.mxu0 %v322
  %373 = vmatpush.msra.mxu0 %v321
  %374 = vmatpush.msra.mxu0 %v320
  %375 = vmatpush.msra.mxu0 %v319
  %376 = vmatpush.msra.mxu0 %v318
  %377 = vmatpush.msra.mxu0 %v317
  %378 = vmatmul.f32.gmra.mxu0 %v54
  %v379 = vpop.f32.mrf.mxu0
  %v380 = vadd.f32 %v354, %v379
  %381 = vmatmul.f32.gmra.mxu0 %v57
  %v382 = vpop.f32.mrf.mxu0
  %v383 = vadd.f32 %v357, %v382
  %384 = vmatmul.f32.gmra.mxu0 %v60
  %v385 = vpop.f32.mrf.mxu0
  %v386 = vadd.f32 %v360, %v385
  %387 = vdwg.mxu0
  %v388 = vmax.f32 %v297, %v380
  %v389 = vmax.f32 %v298, %v383
  %v390 = vmax.f32 %v299, %v386
  %v391 = vld [vmem:[%s2] sm:$0xff]
  %v392 = vld [vmem:[%s2 + $0x8] sm:$0xff]
  %v393 = vld [vmem:[%s2 + $0x10] sm:$0xf]
  %395 = vset.pattern.permute.xlu0 0
  %396 = vperm.xlu0 %395, %v391
  %v397 = vpop.permute.xlu0 %396
  %400 = vset.pattern.permute.xlu0 0
  %401 = vperm.xlu0 %400, %v392
  %v402 = vpop.permute.xlu0 %401
  %405 = vset.pattern.permute.xlu0 0
  %406 = vperm.xlu0 %405, %v393
  %v407 = vpop.permute.xlu0 %406
  %v409 = vadd.f32 %v388, %v397
  %v410 = vadd.f32 %v389, %v402
  %v411 = vadd.f32 %v390, %v407
  %v412 = vmax.f32 %v409, 0.0
  %v413 = vmax.f32 %v410, 0.0
  %v414 = vmax.f32 %v411, 0.0
  %vm415 = vcmask 261120
  %416 = vst.msk [vmem:[%s3] sm:$0xff] %vm415, %v412
  %417 = vst.msk [vmem:[%s3 + $0x8] sm:$0xff] %vm415, %v413
  %vm418 = vcmask 257024
  %419 = vst.msk [vmem:[%s3 + $0x10] sm:$0xf] %vm418, %v414
  // Predicated region
  $region14: #{net_forward.4} parent=0 // pred_check
    _
  $region15: #{net_forward.4} parent=0 // pred_check_branch
    %421 = sbr.rel (0) target = $region17
  $region16: #{net_forward.4} parent=0 // pred_region
    _
  $region17: #{net_forward.4} parent=0 // pred_fallthru
    _
  // Predicated region
  $region18: #{net_forward.4} parent=0 // pred_check
    _
  $region19: #{net_forward.4} parent=0 // pred_check_branch
    %423 = sbr.rel (0) target = $region21
  $region20: #{net_forward.4} parent=0 // pred_region
    _
  $region21: #{net_forward.4} parent=0 // pred_fallthru
    _

// kernel: net_forward.5
$region0: #{net_forward.5}
  #allocation0 [shape = 'u32[]', space=smem, size = 0x4, offset = 0x4, fixed_abs, tag = 'smem constant byte address 0x4 - core index']
  #allocation1 [shape = 'u32[72,128]{1,0:T(1,128)}', space=vmem, size = 0x9000, scoped, tag = 'internal scratch']
  %s0 = inlined_call_operand.vmem [shape: f32[320,2], index: 0, kind: input, shape index: {}]
  %s1 = inlined_call_operand.vmem [shape: f32[50,320], index: 1, kind: input, shape index: {}]
  %s2 = inlined_call_operand.vmem [shape: f32[50,1], index: 2, kind: input, shape index: {}]
  %s3 = inlined_call_operand.vmem [shape: f32[10,50], index: 3, kind: input, shape index: {}]
  %s4 = inlined_call_operand.vmem [shape: f32[10,1], index: 4, kind: input, shape index: {}]
  %s5 = inlined_call_operand.vmem [shape: f32[10,2], index: 5, kind: output, shape index: {}]
  %s6 = sld [smem:[#allocation0]]
  $region30: #{net_forward.5} parent=0
    _
  %s8 = ssub.s32 1, %s6
  %s9 = scalar_select 0, %s8, %s6
  // Predicated region
  $region2: #{net_forward.5} parent=0 // pred_check
    _
  $region3: #{net_forward.5} parent=0 // pred_check_branch
    %11 = sbr.rel (0) target = $region5
  $region4: #{net_forward.5} parent=0 // pred_region
    _
  $region5: #{net_forward.5} parent=0 // pred_fallthru
    _
  // Predicated region
  $region6: #{net_forward.5} parent=0 // pred_check
    _
  $region7: #{net_forward.5} parent=0 // pred_check_branch
    %13 = sbr.rel (0) target = $region9
  $region8: #{net_forward.5} parent=0 // pred_region
    _
  $region9: #{net_forward.5} parent=0 // pred_fallthru
    _
  // Predicated region
  $region10: #{net_forward.5} parent=0 // pred_check
    _
  $region11: #{net_forward.5} parent=0 // pred_check_branch
    %15 = sbr.rel (0) target = $region13
  $region12: #{net_forward.5} parent=0 // pred_region
    _
  $region13: #{net_forward.5} parent=0 // pred_fallthru
    _
  // Predicated region
  $region14: #{net_forward.5} parent=0 // pred_check
    _
  $region15: #{net_forward.5} parent=0 // pred_check_branch
    %17 = sbr.rel (0) target = $region17
  $region16: #{net_forward.5} parent=0 // pred_region
    _
  $region17: #{net_forward.5} parent=0 // pred_fallthru
    _
  // Predicated region
  $region18: #{net_forward.5} parent=0 // pred_check
    _
  $region19: #{net_forward.5} parent=0 // pred_check_branch
    %19 = sbr.rel (0) target = $region21
  $region20: #{net_forward.5} parent=0 // pred_region
    _
  $region21: #{net_forward.5} parent=0 // pred_fallthru
    _
  %v20 = vld [vmem:[%s1] sm:$0xff]
  %v21 = vld [vmem:[%s1 + $0x8] sm:$0xff]
  %v22 = vld [vmem:[%s1 + $0x10] sm:$0xff]
  %v23 = vld [vmem:[%s1 + $0x18] sm:$0xff]
  %v24 = vld [vmem:[%s1 + $0x20] sm:$0xff]
  %v25 = vld [vmem:[%s1 + $0x28] sm:$0xff]
  %v26 = vld [vmem:[%s1 + $0x30] sm:$0xff]
  %v27 = vld [vmem:[%s1 + $0x38] sm:$0xff]
  %v28 = vld [vmem:[%s1 + $0x40] sm:$0xff]
  %v29 = vld [vmem:[%s1 + $0x48] sm:$0xff]
  %v30 = vld [vmem:[%s1 + $0x50] sm:$0xff]
  %v31 = vld [vmem:[%s1 + $0x58] sm:$0xff]
  %v32 = vld [vmem:[%s1 + $0x60] sm:$0xff]
  %v33 = vld [vmem:[%s1 + $0x68] sm:$0xff]
  %v34 = vld [vmem:[%s1 + $0x70] sm:$0xff]
  %v35 = vld [vmem:[%s1 + $0x78] sm:$0xff]
  %v36 = vld [vmem:[%s1 + $0x80] sm:$0xff]
  %v37 = vld [vmem:[%s1 + $0x88] sm:$0xff]
  %v38 = vld [vmem:[%s1 + $0x90] sm:$0x3]
  %v39 = vld [vmem:[%s1 + $0x98] sm:$0x3]
  %v40 = vld [vmem:[%s1 + $0xa0] sm:$0x3]
  %v41 = vld [vmem:[%s0] sm:$0xff]
  %v42 = vld [vmem:[%s0 + $0x8] sm:$0xff]
  %v43 = vld [vmem:[%s0 + $0x10] sm:$0xff]
  %v44 = vld [vmem:[%s0 + $0x18] sm:$0xff]
  %v45 = vld [vmem:[%s0 + $0x20] sm:$0xff]
  %v46 = vld [vmem:[%s0 + $0x28] sm:$0xff]
  %v47 = vld [vmem:[%s0 + $0x30] sm:$0xff]
  %v48 = vld [vmem:[%s0 + $0x38] sm:$0xff]
  %v49 = vld [vmem:[%s0 + $0x40] sm:$0xff]
  %v50 = vld [vmem:[%s0 + $0x48] sm:$0xff]
  %v51 = vld [vmem:[%s0 + $0x50] sm:$0xff]
  %v52 = vld [vmem:[%s0 + $0x58] sm:$0xff]
  %v53 = vld [vmem:[%s0 + $0x60] sm:$0xff]
  %v54 = vld [vmem:[%s0 + $0x68] sm:$0xff]
  %v55 = vld [vmem:[%s0 + $0x70] sm:$0xff]
  %v56 = vld [vmem:[%s0 + $0x78] sm:$0xff]
  %v57 = vld [vmem:[%s0 + $0x80] sm:$0xff]
  %v58 = vld [vmem:[%s0 + $0x88] sm:$0xff]
  %v59 = vld [vmem:[%s0 + $0x90] sm:$0xff]
  %v60 = vld [vmem:[%s0 + $0x98] sm:$0xff]
  %v61 = vld [vmem:[%s0 + $0xa0] sm:$0xff]
  %v62 = vld [vmem:[%s0 + $0xa8] sm:$0xff]
  %v63 = vld [vmem:[%s0 + $0xb0] sm:$0xff]
  %v64 = vld [vmem:[%s0 + $0xb8] sm:$0xff]
  %v65 = vld [vmem:[%s0 + $0xc0] sm:$0xff]
  %v66 = vld [vmem:[%s0 + $0xc8] sm:$0xff]
  %v67 = vld [vmem:[%s0 + $0xd0] sm:$0xff]
  %v68 = vld [vmem:[%s0 + $0xd8] sm:$0xff]
  %v69 = vld [vmem:[%s0 + $0xe0] sm:$0xff]
  %v70 = vld [vmem:[%s0 + $0xe8] sm:$0xff]
  %v71 = vld [vmem:[%s0 + $0xf0] sm:$0xff]
  %v72 = vld [vmem:[%s0 + $0xf8] sm:$0xff]
  %v73 = vld [vmem:[%s0 + $0x100] sm:$0xff]
  %v74 = vld [vmem:[%s0 + $0x108] sm:$0xff]
  %v75 = vld [vmem:[%s0 + $0x110] sm:$0xff]
  %v76 = vld [vmem:[%s0 + $0x118] sm:$0xff]
  %v77 = vld [vmem:[%s0 + $0x120] sm:$0xff]
  %v78 = vld [vmem:[%s0 + $0x128] sm:$0xff]
  %v79 = vld [vmem:[%s0 + $0x130] sm:$0xff]
  %v80 = vld [vmem:[%s0 + $0x138] sm:$0xff]
  %v81 = vld [vmem:[%s2] sm:$0xff]
  %v82 = vld [vmem:[%s2 + $0x8] sm:$0xff]
  %v83 = vld [vmem:[%s2 + $0x10] sm:$0xff]
  %v84 = vld [vmem:[%s2 + $0x18] sm:$0xff]
  %v85 = vld [vmem:[%s2 + $0x20] sm:$0xff]
  %v86 = vld [vmem:[%s2 + $0x28] sm:$0xff]
  %v87 = vld [vmem:[%s2 + $0x30] sm:$0x3]
  %89 = vset.pattern.permute.xlu0 0
  %90 = vperm.xlu0 %89, %v81
  %v91 = vpop.permute.xlu0 %90
  %94 = vset.pattern.permute.xlu0 0
  %95 = vperm.xlu0 %94, %v82
  %v96 = vpop.permute.xlu0 %95
  %99 = vset.pattern.permute.xlu0 0
  %100 = vperm.xlu0 %99, %v83
  %v101 = vpop.permute.xlu0 %100
  %104 = vset.pattern.permute.xlu0 0
  %105 = vperm.xlu0 %104, %v84
  %v106 = vpop.permute.xlu0 %105
  %109 = vset.pattern.permute.xlu0 0
  %110 = vperm.xlu0 %109, %v85
  %v111 = vpop.permute.xlu0 %110
  %114 = vset.pattern.permute.xlu0 0
  %115 = vperm.xlu0 %114, %v86
  %v116 = vpop.permute.xlu0 %115
  %119 = vset.pattern.permute.xlu0 0
  %120 = vperm.xlu0 %119, %v87
  %v121 = vpop.permute.xlu0 %120
  %vm123 = vcmask 523264
  %v125 = vsel %vm123, %v22, 0
  %v128 = vsel %vm123, %v25, 0
  %v131 = vsel %vm123, %v28, 0
  %v134 = vsel %vm123, %v31, 0
  %v137 = vsel %vm123, %v34, 0
  %v140 = vsel %vm123, %v37, 0
  %v143 = vsel %vm123, %v40, 0
  %145 = vmatpush.msra.mxu0 %v56
  %146 = vmatpush.msra.mxu0 %v55
  %147 = vmatpush.msra.mxu0 %v54
  %148 = vmatpush.msra.mxu0 %v53
  %149 = vmatpush.msra.mxu0 %v52
  %150 = vmatpush.msra.mxu0 %v51
  %151 = vmatpush.msra.mxu0 %v50
  %152 = vmatpush.msra.mxu0 %v49
  %153 = vmatpush.msra.mxu0 %v48
  %154 = vmatpush.msra.mxu0 %v47
  %155 = vmatpush.msra.mxu0 %v46
  %156 = vmatpush.msra.mxu0 %v45
  %157 = vmatpush.msra.mxu0 %v44
  %158 = vmatpush.msra.mxu0 %v43
  %159 = vmatpush.msra.mxu0 %v42
  %160 = vmatpush.msra.mxu0 %v41
  %161 = vmatmul.f32.gmra.mxu0 %v20
  %v162 = vpop.f32.mrf.mxu0
  %v163 = vadd.f32 %v91, %v162
  %164 = vmatmul.f32.gmra.mxu0 %v23
  %v165 = vpop.f32.mrf.mxu0
  %v166 = vadd.f32 %v96, %v165
  %167 = vmatmul.f32.gmra.mxu0 %v26
  %v168 = vpop.f32.mrf.mxu0
  %v169 = vadd.f32 %v101, %v168
  %170 = vmatmul.f32.gmra.mxu0 %v29
  %v171 = vpop.f32.mrf.mxu0
  %v172 = vadd.f32 %v106, %v171
  %173 = vmatmul.f32.gmra.mxu0 %v32
  %v174 = vpop.f32.mrf.mxu0
  %v175 = vadd.f32 %v111, %v174
  %176 = vmatmul.f32.gmra.mxu0 %v35
  %v177 = vpop.f32.mrf.mxu0
  %v178 = vadd.f32 %v116, %v177
  %179 = vmatmul.f32.gmra.mxu0 %v38
  %v180 = vpop.f32.mrf.mxu0
  %v181 = vadd.f32 %v121, %v180
  %182 = vdwg.mxu0
  %183 = vmatpush.msra.mxu0 %v72
  %184 = vmatpush.msra.mxu0 %v71
  %185 = vmatpush.msra.mxu0 %v70
  %186 = vmatpush.msra.mxu0 %v69
  %187 = vmatpush.msra.mxu0 %v68
  %188 = vmatpush.msra.mxu0 %v67
  %189 = vmatpush.msra.mxu0 %v66
  %190 = vmatpush.msra.mxu0 %v65
  %191 = vmatpush.msra.mxu0 %v64
  %192 = vmatpush.msra.mxu0 %v63
  %193 = vmatpush.msra.mxu0 %v62
  %194 = vmatpush.msra.mxu0 %v61
  %195 = vmatpush.msra.mxu0 %v60
  %196 = vmatpush.msra.mxu0 %v59
  %197 = vmatpush.msra.mxu0 %v58
  %198 = vmatpush.msra.mxu0 %v57
  %199 = vmatmul.f32.gmra.mxu0 %v21
  %v200 = vpop.f32.mrf.mxu0
  %v201 = vadd.f32 %v163, %v200
  %202 = vmatmul.f32.gmra.mxu0 %v24
  %v203 = vpop.f32.mrf.mxu0
  %v204 = vadd.f32 %v166, %v203
  %205 = vmatmul.f32.gmra.mxu0 %v27
  %v206 = vpop.f32.mrf.mxu0
  %v207 = vadd.f32 %v169, %v206
  %208 = vmatmul.f32.gmra.mxu0 %v30
  %v209 = vpop.f32.mrf.mxu0
  %v210 = vadd.f32 %v172, %v209
  %211 = vmatmul.f32.gmra.mxu0 %v33
  %v212 = vpop.f32.mrf.mxu0
  %v213 = vadd.f32 %v175, %v212
  %214 = vmatmul.f32.gmra.mxu0 %v36
  %v215 = vpop.f32.mrf.mxu0
  %v216 = vadd.f32 %v178, %v215
  %217 = vmatmul.f32.gmra.mxu0 %v39
  %v218 = vpop.f32.mrf.mxu0
  %v219 = vadd.f32 %v181, %v218
  %220 = vdwg.mxu0
  %221 = vmatpush.msra.mxu0 0.0
  %222 = vmatpush.msra.mxu0 0.0
  %223 = vmatpush.msra.mxu0 0.0
  %224 = vmatpush.msra.mxu0 0.0
  %225 = vmatpush.msra.mxu0 0.0
  %226 = vmatpush.msra.mxu0 0.0
  %227 = vmatpush.msra.mxu0 0.0
  %228 = vmatpush.msra.mxu0 0.0
  %229 = vmatpush.msra.mxu0 %v80
  %230 = vmatpush.msra.mxu0 %v79
  %231 = vmatpush.msra.mxu0 %v78
  %232 = vmatpush.msra.mxu0 %v77
  %233 = vmatpush.msra.mxu0 %v76
  %234 = vmatpush.msra.mxu0 %v75
  %235 = vmatpush.msra.mxu0 %v74
  %236 = vmatpush.msra.mxu0 %v73
  %237 = vmatmul.f32.gmra.mxu0 %v125
  %v238 = vpop.f32.mrf.mxu0
  %v239 = vadd.f32 %v201, %v238
  %240 = vmatmul.f32.gmra.mxu0 %v128
  %v241 = vpop.f32.mrf.mxu0
  %v242 = vadd.f32 %v204, %v241
  %243 = vmatmul.f32.gmra.mxu0 %v131
  %v244 = vpop.f32.mrf.mxu0
  %v245 = vadd.f32 %v207, %v244
  %246 = vmatmul.f32.gmra.mxu0 %v134
  %v247 = vpop.f32.mrf.mxu0
  %v248 = vadd.f32 %v210, %v247
  %249 = vmatmul.f32.gmra.mxu0 %v137
  %v250 = vpop.f32.mrf.mxu0
  %v251 = vadd.f32 %v213, %v250
  %252 = vmatmul.f32.gmra.mxu0 %v140
  %v253 = vpop.f32.mrf.mxu0
  %v254 = vadd.f32 %v216, %v253
  %255 = vmatmul.f32.gmra.mxu0 %v143
  %v256 = vpop.f32.mrf.mxu0
  %v257 = vadd.f32 %v219, %v256
  %258 = vdwg.mxu0
  %v259 = vmax.f32 %v239, 0.0
  %v260 = vmax.f32 %v242, 0.0
  %v261 = vmax.f32 %v245, 0.0
  %v262 = vmax.f32 %v248, 0.0
  %v263 = vmax.f32 %v251, 0.0
  %v264 = vmax.f32 %v254, 0.0
  %v265 = vmax.f32 %v257, 0.0
  %v266 = vld [vmem:[%s3] sm:$0xff]
  %v267 = vld [vmem:[%s3 + $0x8] sm:$0x3]
  %v268 = vld [vmem:[%s4] sm:$0xff]
  %v269 = vld [vmem:[%s4 + $0x8] sm:$0x3]
  %271 = vset.pattern.permute.xlu0 0
  %272 = vperm.xlu0 %271, %v268
  %v273 = vpop.permute.xlu0 %272
  %276 = vset.pattern.permute.xlu0 0
  %277 = vperm.xlu0 %276, %v269
  %v278 = vpop.permute.xlu0 %277
  %vm280 = vcmask 408576
  %v282 = vsel %vm280, %v266, 0
  %v285 = vsel %vm280, %v267, 0
  %vm287 = vcmask 1041408
  %v289 = vsel %vm287, %v265, 0
  %291 = vmatpush.msra.mxu0 0.0
  %292 = vmatpush.msra.mxu0 0.0
  %293 = vmatpush.msra.mxu0 0.0
  %294 = vmatpush.msra.mxu0 0.0
  %295 = vmatpush.msra.mxu0 0.0
  %296 = vmatpush.msra.mxu0 0.0
  %297 = vmatpush.msra.mxu0 0.0
  %298 = vmatpush.msra.mxu0 0.0
  %299 = vmatpush.msra.mxu0 0.0
  %300 = vmatpush.msra.mxu0 %v289
  %301 = vmatpush.msra.mxu0 %v264
  %302 = vmatpush.msra.mxu0 %v263
  %303 = vmatpush.msra.mxu0 %v262
  %304 = vmatpush.msra.mxu0 %v261
  %305 = vmatpush.msra.mxu0 %v260
  %306 = vmatpush.msra.mxu0 %v259
  %307 = vmatmul.f32.gmra.mxu0 %v282
  %v308 = vpop.f32.mrf.mxu0
  %v309 = vadd.f32 %v273, %v308
  %310 = vmatmul.f32.gmra.mxu0 %v285
  %v311 = vpop.f32.mrf.mxu0
  %v312 = vadd.f32 %v278, %v311
  %313 = vdwg.mxu0
  %vm314 = vcmask 15360
  %315 = vst.msk [vmem:[%s5] sm:$0xff] %vm314, %v309
  %vm316 = vcmask 9216
  %317 = vst.msk [vmem:[%s5 + $0x8] sm:$0x3] %vm316, %v312
  // Predicated region
  $region22: #{net_forward.5} parent=0 // pred_check
    _
  $region23: #{net_forward.5} parent=0 // pred_check_branch
    %319 = sbr.rel (0) target = $region25
  $region24: #{net_forward.5} parent=0 // pred_region
    _
  $region25: #{net_forward.5} parent=0 // pred_fallthru
    _
  // Predicated region
  $region26: #{net_forward.5} parent=0 // pred_check
    _
  $region27: #{net_forward.5} parent=0 // pred_check_branch
    %321 = sbr.rel (0) target = $region29
  $region28: #{net_forward.5} parent=0 // pred_region
    _
  $region29: #{net_forward.5} parent=0 // pred_fallthru
    _

</llo_original>
